<compile_context>
chip_gen: v6e
topology: v6e:2x2x1
jax: 0.10.0
libtpu: 0.0.40
codegen_flags: <defaults>
</compile_context>

<pallas_src>
import functools

import jax
import jax.numpy as jnp
from jax import lax
from jax.experimental import pallas as pl
from jax.experimental.pallas import tpu as pltpu

BN_EPS = 1e-5


def _round_up(x, m):
    return (x + m - 1) // m * m


def _cdiv(a, b):
    return -(-a // b)


def _device_cfg():
    """(pref_tm, pref_tn, whole-K-in-VMEM cap, vmem_limit_bytes) per chip."""
    kind = ""
    try:
        kind = jax.devices()[0].device_kind.lower()
    except Exception:  # pragma: no cover
        pass
    if "v2" in kind or "v3" in kind:   # tiny VMEM: stay small, keep default limit
        return 128, 128, 2048, None
    if "v5" in kind:                   # single vst slot, 16 MiB default scoped
        return 128, 128, 8192, 64 << 20
    if "v4" in kind:
        return 128, 128, 8192, 96 << 20
    if "v6" in kind:                   # 128 MiB VMEM: whole-K even for 9*2048
        return 256, 256, 18432, 96 << 20
    # v7x / unknown: 64 MiB physical VMEM, 2 TensorCores -> conservative caps
    return 256, 256, 6144, 48 << 20


_PREF_TM, _PREF_TN, _K_FULL_MAX, _VMEM_LIMIT = _device_cfg()
_B_RESIDENT_MAX = 4 << 20   # padded bf16 weight bytes we keep VMEM-resident


# ----------------------------------------------------------------------------
# Pallas kernels
# ----------------------------------------------------------------------------
def _apply_act(y, act):
    if act == "relu":
        return jnp.maximum(y, 0.0)
    if act == "sigmoid":
        # exact, numerically stable sigmoid (no approximate reciprocal)
        e = jnp.exp(-jnp.abs(y))
        return jnp.where(y >= 0, 1.0, e) / (1.0 + e)
    return y


def _mm_single_kernel(a_ref, b_ref, s_ref, t_ref, *rest,
                      act, has_extra, b_resident, tn):
    """Whole-K matmul: no accumulator RMW, single store per output tile."""
    if has_extra:
        e_ref, o_ref = rest
    else:
        (o_ref,) = rest
    if b_resident:
        # B is the full (Kp, Np) weight, fetched once; slice the lane window.
        j = pl.program_id(1)
        col0 = pl.multiple_of(j * tn, 128)
        b = b_ref[:, pl.ds(col0, tn)]
    else:
        b = b_ref[...]
    y = jnp.dot(a_ref[...], b, preferred_element_type=jnp.float32)
    y = y * s_ref[...] + t_ref[...]
    if has_extra:
        y = y + e_ref[...].astype(jnp.float32)       # bf16 residual, f32 math
    y = _apply_act(y, act)
    o_ref[...] = y.astype(o_ref.dtype)


def _mm_multi_kernel(a_ref, b_ref, s_ref, t_ref, *rest, act, has_extra):
    """K-tiled matmul with an f32 VMEM accumulator (rare: very large K)."""
    if has_extra:
        e_ref, o_ref, acc_ref = rest
    else:
        o_ref, acc_ref = rest

    @pl.when(pl.program_id(2) == 0)
    def _init():
        acc_ref[...] = jnp.zeros_like(acc_ref)

    acc_ref[...] += jnp.dot(a_ref[...], b_ref[...],
                            preferred_element_type=jnp.float32)

    @pl.when(pl.program_id(2) == pl.num_programs(2) - 1)
    def _fin():
        y = acc_ref[...] * s_ref[...] + t_ref[...]
        if has_extra:
            y = y + e_ref[...].astype(jnp.float32)
        y = _apply_act(y, act)
        o_ref[...] = y.astype(o_ref.dtype)


@functools.lru_cache(maxsize=None)
def _matmul_callable(Mp, Kp, Np, tm, tn, tk, ksteps, act, has_extra,
                     b_resident, out_dtype):
    if ksteps == 1:
        if b_resident:
            # grid (i, j): A block constant over j, B fully resident -> A and
            # B each DMA'd from HBM exactly once.
            grid = (Mp // tm, Np // tn)
            in_specs = [
                pl.BlockSpec((tm, Kp), lambda i, j: (i, 0)),
                pl.BlockSpec((Kp, Np), lambda i, j: (0, 0)),
                pl.BlockSpec((1, tn), lambda i, j: (0, j)),
                pl.BlockSpec((1, tn), lambda i, j: (0, j)),
            ]
            if has_extra:
                in_specs.append(pl.BlockSpec((tm, tn), lambda i, j: (i, j)))
            out_specs = pl.BlockSpec((tm, tn), lambda i, j: (i, j))
        else:
            # grid (j, i): B tile constant over the (large) M sweep -> weights
            # streamed from HBM exactly once.
            grid = (Np // tn, Mp // tm)
            in_specs = [
                pl.BlockSpec((tm, Kp), lambda j, i: (i, 0)),
                pl.BlockSpec((Kp, tn), lambda j, i: (0, j)),
                pl.BlockSpec((1, tn), lambda j, i: (0, j)),
                pl.BlockSpec((1, tn), lambda j, i: (0, j)),
            ]
            if has_extra:
                in_specs.append(pl.BlockSpec((tm, tn), lambda j, i: (i, j)))
            out_specs = pl.BlockSpec((tm, tn), lambda j, i: (i, j))
        kern = functools.partial(_mm_single_kernel, act=act,
                                 has_extra=has_extra,
                                 b_resident=b_resident, tn=tn)
        scratch = []
        semantics = ("parallel", "parallel")
    else:
        grid = (Mp // tm, Np // tn, ksteps)
        in_specs = [
            pl.BlockSpec((tm, tk), lambda i, j, k: (i, k)),
            pl.BlockSpec((tk, tn), lambda i, j, k: (k, j)),
            pl.BlockSpec((1, tn), lambda i, j, k: (0, j)),
            pl.BlockSpec((1, tn), lambda i, j, k: (0, j)),
        ]
        if has_extra:
            in_specs.append(pl.BlockSpec((tm, tn), lambda i, j, k: (i, j)))
        out_specs = pl.BlockSpec((tm, tn), lambda i, j, k: (i, j))
        kern = functools.partial(_mm_multi_kernel, act=act,
                                 has_extra=has_extra)
        scratch = [pltpu.VMEM((tm, tn), jnp.float32)]
        semantics = ("parallel", "parallel", "arbitrary")

    fn = pl.pallas_call(
        kern,
        out_shape=jax.ShapeDtypeStruct((Mp, Np), out_dtype),
        grid_spec=pltpu.PrefetchScalarGridSpec(
            num_scalar_prefetch=0,
            grid=grid,
            in_specs=in_specs,
            out_specs=out_specs,
            scratch_shapes=scratch,
        ),
        compiler_params=pltpu.CompilerParams(
            dimension_semantics=semantics,
            vmem_limit_bytes=_VMEM_LIMIT),
    )
    return jax.jit(fn)


def fused_matmul(a, b, scale, shift, extra=None, act="none",
                 out_dtype=jnp.bfloat16):
    """out = act((a @ b) * scale + shift [+ extra]), f32 accumulation.

    Heavy problems run on the MXU through the Pallas kernels above (bf16
    operands, bf16 output by default).  Skinny/tiny problems (padding and
    per-call overhead dominated) fall back to plain XLA in f32.
    """
    M, K = a.shape
    K2, N = b.shape
    assert K == K2
    scale = scale.astype(jnp.float32)
    shift = shift.astype(jnp.float32)

    if N < 32 or M < 8 or K < 8:
        y = jnp.dot(a.astype(jnp.float32), b.astype(jnp.float32))
        y = y * scale[None, :] + shift[None, :]
        if extra is not None:
            y = y + extra.astype(jnp.float32)
        if act == "relu":
            y = jnp.maximum(y, 0.0)
        elif act == "sigmoid":
            y = jax.nn.sigmoid(y)
        return y.astype(out_dtype)

    # --- tile selection ----------------------------------------------------
    if M % _PREF_TM == 0 or M >= 2 * _PREF_TM:
        tm = _PREF_TM
    elif M >= 128:
        tm = 128
    else:
        tm = _round_up(M, 8)
    Mp = _round_up(M, tm)
    Np = _round_up(N, 128)
    tn = _PREF_TN if Np % _PREF_TN == 0 else 128
    # v7x has two TensorCores: make sure at least 2 programs exist on a
    # parallel axis (harmless elsewhere).
    if Mp // tm == 1 and Np // tn == 1 and M > 8:
        tm = _round_up(_cdiv(M, 2), 8)
        Mp = _round_up(M, tm)

    if K <= _K_FULL_MAX:
        Kp = _round_up(K, 128)          # lane-aligned whole-K, no accumulator
        tk = Kp
        ksteps = 1
    else:
        ksteps = _cdiv(K, _K_FULL_MAX)
        tk = _round_up(_cdiv(K, ksteps), 128)
        Kp = tk * ksteps

    b_resident = (ksteps == 1) and (Kp * Np * 2 <= _B_RESIDENT_MAX)

    a = a.astype(jnp.bfloat16)
    b = b.astype(jnp.bfloat16)
    if (Mp, Kp) != (M, K):
        a = jnp.pad(a, ((0, Mp - M), (0, Kp - K)))
    if (Kp, Np) != (K, N):
        b = jnp.pad(b, ((0, Kp - K), (0, Np - N)))
    s = scale.reshape(1, N)
    t = shift.reshape(1, N)
    if Np != N:
        s = jnp.pad(s, ((0, 0), (0, Np - N)))
        t = jnp.pad(t, ((0, 0), (0, Np - N)))

    args = [a, b, s, t]
    has_extra = extra is not None
    if has_extra:
        e = extra.astype(jnp.bfloat16)             # residual travels in bf16
        if (Mp, Np) != (M, N):
            e = jnp.pad(e, ((0, Mp - M), (0, Np - N)))
        args.append(e)

    out = _matmul_callable(Mp, Kp, Np, tm, tn, tk, ksteps, act, has_extra,
                           b_resident, out_dtype)(*args)
    if (Mp, Np) != (M, N):
        out = out[:M, :N]
    return out


# ----------------------------------------------------------------------------
# Conv wrappers (NHWC im2col -> fused Pallas matmul)
# ----------------------------------------------------------------------------
# TODO(synk): fold the kh*kw taps into the K grid axis (in-kernel im2col over
# shifted NHWC windows) so the 9x-expanded patch tensor never touches HBM.
def _im2col(x, kh, kw, stride, padding, dilation):
    """x: NHWC -> A:(N*OH*OW, kh*kw*C)  (tap-major, channel-minor)."""
    N, H, W, C = x.shape
    OH = (H + 2 * padding - dilation * (kh - 1) - 1) // stride + 1
    OW = (W + 2 * padding - dilation * (kw - 1) - 1) // stride + 1
    if kh == 1 and kw == 1 and padding == 0:
        A = x[:, ::stride, ::stride, :].reshape(N * OH * OW, C)
        return A, OH, OW
    xp = jnp.pad(x, ((0, 0), (padding, padding), (padding, padding), (0, 0)))
    cols = []
    for i in range(kh):
        for j in range(kw):
            cols.append(
                xp[:, i * dilation:i * dilation + (OH - 1) * stride + 1:stride,
                      j * dilation:j * dilation + (OW - 1) * stride + 1:stride,
                      :])
    patches = jnp.stack(cols, axis=3)               # (N, OH, OW, kh*kw, C)
    A = patches.reshape(N * OH * OW, kh * kw * C)
    return A, OH, OW


def conv2d(x, w, *, stride=1, padding=0, dilation=1,
           scale=None, shift=None, act="none", extra=None,
           out_dtype=jnp.bfloat16):
    """x: NHWC; w: (Cout, Cin, kh, kw) PyTorch layout; returns NHWC."""
    N = x.shape[0]
    Cout, Cin, kh, kw = w.shape
    assert x.shape[-1] == Cin, (x.shape, w.shape)
    A, OH, OW = _im2col(x, kh, kw, stride, padding, dilation)
    B = jnp.transpose(w, (2, 3, 1, 0)).reshape(kh * kw * Cin, Cout)
    if scale is None:
        scale = jnp.ones((Cout,), jnp.float32)
    if shift is None:
        shift = jnp.zeros((Cout,), jnp.float32)
    e2 = None if extra is None else extra.reshape(N * OH * OW, Cout)
    out = fused_matmul(A, B, scale, shift, extra=e2, act=act,
                       out_dtype=out_dtype)
    return out.reshape(N, OH, OW, Cout)


def conv_transpose2d(x, w_t, bias, *, act="none", out_dtype=jnp.bfloat16):
    """ConvTranspose2d(k=4, s=2, p=1) as ONE batched sub-pixel matmul.

    A single 2x2 im2col over the once-padded input ((H+1)*(W+1) rows) times
    the 4 parity weight sets concatenated along Cout, then per-parity shifted
    HxW windows of the result are interleaved.  No zero-stuffed input, no 4
    separate pallas_call launches.
    """
    Cin, Cout, kh, kw = w_t.shape
    assert kh == 4 and kw == 4
    N, H, W, C = x.shape
    assert C == Cin
    # parity a (rows): taps kh = (3,1) for even rows, (2,0) for odd rows;
    # parity b (cols): same for kw.
    tap_idx = [jnp.array([3, 1]), jnp.array([2, 0])]
    ws = []
    for a in range(2):
        for b_ in range(2):
            sub = jnp.take(w_t, tap_idx[a], axis=2)
            sub = jnp.take(sub, tap_idx[b_], axis=3)        # (Cin,Cout,2,2)
            ws.append(jnp.transpose(sub, (1, 0, 2, 3)))     # (Cout,Cin,2,2)
    w_cat = jnp.concatenate(ws, axis=0)                     # (4*Cout,Cin,2,2)
    shift_cat = jnp.tile(bias, 4)

    xp = jnp.pad(x, ((0, 0), (1, 1), (1, 1), (0, 0)))
    g = conv2d(xp, w_cat, shift=shift_cat, act=act, out_dtype=out_dtype)
    g = g.reshape(N, H + 1, W + 1, 4, Cout)
    y00 = g[:, :H, :W, 0]          # out[2m,   2q  ]
    y01 = g[:, :H, 1:, 1]          # out[2m,   2q+1]
    y10 = g[:, 1:, :W, 2]          # out[2m+1, 2q  ]
    y11 = g[:, 1:, 1:, 3]          # out[2m+1, 2q+1]
    even = jnp.stack([y00, y01], axis=3).reshape(N, H, 2 * W, Cout)
    odd = jnp.stack([y10, y11], axis=3).reshape(N, H, 2 * W, Cout)
    return jnp.stack([even, odd], axis=2).reshape(N, 2 * H, 2 * W, Cout)


# ----------------------------------------------------------------------------
# Small glue ops (plain JAX)
# ----------------------------------------------------------------------------
def make_bn(c):
    return {"gamma": jnp.ones((c,), jnp.float32),
            "beta": jnp.zeros((c,), jnp.float32),
            "mean": jnp.zeros((c,), jnp.float32),
            "var": jnp.ones((c,), jnp.float32)}


def bn_scale_shift(bn):
    s = bn["gamma"] / jnp.sqrt(bn["var"] + BN_EPS)
    t = bn["beta"] - bn["mean"] * s
    return s, t


def conv_bn_relu(x, w, bn, out_dtype=jnp.bfloat16, **kw):
    s, t = bn_scale_shift(bn)
    return conv2d(x, w, scale=s, shift=t, act="relu", out_dtype=out_dtype, **kw)


# TODO(synk): max-pool / adaptive avg-pool / bilinear resize are cheap data
# movement at these sizes; kept as plain XLA glue rather than Pallas kernels.
def maxpool_3x3_s2_p1(x):
    init = jnp.asarray(-jnp.inf, x.dtype)
    return lax.reduce_window(x, init, lax.max,
                             (1, 3, 3, 1), (1, 2, 2, 1),
                             [(0, 0), (1, 1), (1, 1), (0, 0)])


def bilinear_resize(x, out_h, out_w, align_corners):
    """NHWC; matches torch F.interpolate(mode='bilinear', align_corners=...)."""
    N, H, W, C = x.shape

    def coords(out_size, in_size):
        d = jnp.arange(out_size, dtype=jnp.float32)
        if align_corners:
            if out_size == 1:
                src = jnp.zeros_like(d)
            else:
                src = d * (in_size - 1) / (out_size - 1)
        else:
            src = (d + 0.5) * (in_size / out_size) - 0.5
            src = jnp.maximum(src, 0.0)
        i0 = jnp.clip(jnp.floor(src).astype(jnp.int32), 0, in_size - 1)
        i1 = jnp.clip(i0 + 1, 0, in_size - 1)
        w1 = src - i0.astype(jnp.float32)
        return i0, i1, w1

    h0, h1, wh = coords(out_h, H)
    w0, w1, ww = coords(out_w, W)
    xh = (x[:, h0, :, :] * (1.0 - wh)[None, :, None, None]
          + x[:, h1, :, :] * wh[None, :, None, None])
    out = (xh[:, :, w0, :] * (1.0 - ww)[None, None, :, None]
           + xh[:, :, w1, :] * ww[None, None, :, None])
    return out


# ----------------------------------------------------------------------------
# Deterministic parameter construction
# ----------------------------------------------------------------------------
class ParamGen:
    def __init__(self, key):
        self.key = key
        self.count = 0

    def _next(self):
        self.count += 1
        return jax.random.fold_in(self.key, self.count)

    def conv(self, cout, cin, kh, kw):
        std = (2.0 / (cin * kh * kw)) ** 0.5      # kaiming-normal style
        return std * jax.random.normal(self._next(), (cout, cin, kh, kw),
                                       jnp.float32)

    def convt(self, cin, cout, kh, kw):
        std = (2.0 / (cout * kh * kw)) ** 0.5
        return std * jax.random.normal(self._next(), (cin, cout, kh, kw),
                                       jnp.float32)

    @staticmethod
    def zeros(n):
        return jnp.zeros((n,), jnp.float32)


def make_layer_params(pg, inplanes, planes, nblocks):
    blocks = []
    for i in range(nblocks):
        inp = inplanes if i == 0 else planes * 4
        p = {"w1": pg.conv(planes, inp, 1, 1), "bn1": make_bn(planes),
             "w2": pg.conv(planes, planes, 3, 3), "bn2": make_bn(planes),
             "w3": pg.conv(planes * 4, planes, 1, 1), "bn3": make_bn(planes * 4)}
        if i == 0:
            p["wd"] = pg.conv(planes * 4, inplanes, 1, 1)
            p["bnd"] = make_bn(planes * 4)
        blocks.append(p)
    return blocks


def init_net_params(key, classes):
    pg = ParamGen(key)
    P = {}
    # ResNet-50 deep-stem backbone (3x3 stride-2 stem -> 128 ch, as in semseg)
    P["stem"] = {"w1": pg.conv(64, 3, 3, 3), "bn1": make_bn(64),
                 "w2": pg.conv(64, 64, 3, 3), "bn2": make_bn(64),
                 "w3": pg.conv(128, 64, 3, 3), "bn3": make_bn(128)}
    P["layer1"] = make_layer_params(pg, 128, 64, 3)
    P["layer2"] = make_layer_params(pg, 256, 128, 4)
    P["layer3"] = make_layer_params(pg, 512, 256, 6)
    P["layer4"] = make_layer_params(pg, 1024, 512, 3)

    def side(cin):
        return {"conv1_w": pg.conv(classes, cin, 3, 3),
                "conv1_b": pg.zeros(classes),
                "conv2_w": pg.conv(1, classes, 1, 1)}

    P["side0"], P["side1"] = side(128), side(256)
    P["side2"], P["side4"] = side(512), side(2048)
    P["fuse_w"] = pg.conv(1, 4, 1, 1)

    aspp_in = 2048 + 256
    P["aspp"] = {"head_w": pg.conv(256, aspp_in, 1, 1), "head_bn": make_bn(256),
                 "rate1_w": pg.conv(256, aspp_in, 3, 3), "rate1_bn": make_bn(256),
                 "rate2_w": pg.conv(256, aspp_in, 3, 3), "rate2_bn": make_bn(256),
                 "rate3_w": pg.conv(256, aspp_in, 3, 3), "rate3_bn": make_bn(256),
                 "tail_w": pg.conv(256, aspp_in - 256, 1, 1), "tail_bn": make_bn(256),
                 "edge_w": pg.conv(256, 1, 1, 1), "edge_bn": make_bn(256),
                 "proj_w": pg.conv(256, 5 * 256, 1, 1), "proj_bn": make_bn(256)}

    P["bot_fine_w"] = pg.conv(48, 256, 1, 1)
    P["cls"] = {"w1": pg.conv(256, 256 + 48, 3, 3), "bn1": make_bn(256),
                "w2": pg.conv(classes, 256, 1, 1), "b2": pg.zeros(classes)}

    P["conf"] = {"d1_w": pg.conv(64, classes, 3, 3), "d1_b": pg.zeros(64),
                 "d2_w": pg.conv(128, 64, 3, 3), "d2_b": pg.zeros(128),
                 "d3_w": pg.conv(256, 128, 3, 3), "d3_b": pg.zeros(256),
                 "conv_w": pg.conv(256, 256, 3, 3), "conv_b": pg.zeros(256),
                 "u3_w": pg.convt(256, 128, 4, 4), "u3_b": pg.zeros(128),
                 "u2_w": pg.convt(128, 64, 4, 4), "u2_b": pg.zeros(64),
                 "u1_w": pg.convt(64, 1, 4, 4), "u1_b": pg.zeros(1)}
    return P


# ----------------------------------------------------------------------------
# Forward pass (all activations NHWC, bf16 between convs)
# ----------------------------------------------------------------------------
def bottleneck_forward(x, p, conv2_stride, dilation, ds_stride):
    s1, t1 = bn_scale_shift(p["bn1"])
    if "wd" in p and ds_stride == 1:
        # Batch the w1 and downsample 1x1 convs (same input, same stride)
        # into one matmul with concatenated Cout -> fills the N grid axis.
        sd, td = bn_scale_shift(p["bnd"])
        planes = p["w1"].shape[0]
        w_cat = jnp.concatenate([p["w1"], p["wd"]], axis=0)
        s_cat = jnp.concatenate([s1, sd])
        t_cat = jnp.concatenate([t1, td])
        both = conv2d(x, w_cat, scale=s_cat, shift=t_cat)
        out = jnp.maximum(both[..., :planes], 0.0)   # relu only on the w1 part
        identity = both[..., planes:]
    else:
        out = conv2d(x, p["w1"], scale=s1, shift=t1, act="relu")
        if "wd" in p:
            sd, td = bn_scale_shift(p["bnd"])
            identity = conv2d(x, p["wd"], stride=ds_stride, scale=sd, shift=td)
        else:
            identity = x
    s2, t2 = bn_scale_shift(p["bn2"])
    out = conv2d(out, p["w2"], stride=conv2_stride, padding=dilation,
                 dilation=dilation, scale=s2, shift=t2, act="relu")
    s3, t3 = bn_scale_shift(p["bn3"])
    # Residual add + ReLU fused into the w3 matmul epilogue (bf16 residual).
    return conv2d(out, p["w3"], scale=s3, shift=t3, extra=identity, act="relu")


def layer_forward(x, blocks, conv2_stride_first, dilation, ds_stride_first):
    for i, bp in enumerate(blocks):
        x = bottleneck_forward(
            x, bp,
            conv2_stride=conv2_stride_first if i == 0 else 1,
            dilation=dilation,
            ds_stride=ds_stride_first if i == 0 else 1)
    return x


def side_output_forward(x, p):
    # classes / 1-channel heads: skinny -> handled by the XLA fallback (f32).
    h = conv2d(x, p["conv1_w"], padding=1, shift=p["conv1_b"], act="relu",
               out_dtype=jnp.float32)
    return conv2d(h, p["conv2_w"], out_dtype=jnp.float32)


def aspp_forward(x, edges, p, atrous_rates):
    N, H, W, _ = x.shape

    # One batched 1x1 edge conv for all four (resized, sigmoided) edge maps:
    # same weights, stacked along batch -> one bigger matmul (K=1 -> XLA).
    se, te = bn_scale_shift(p["edge_bn"])
    e_all = jnp.concatenate(
        [bilinear_resize(jax.nn.sigmoid(e), H, W, align_corners=True)
         for e in edges], axis=0)                     # (4N, H, W, 1)
    f_all = conv2d(e_all, p["edge_w"], scale=se, shift=te, act="relu")
    f0, f1, f2, f4 = jnp.split(f_all, 4, axis=0)

    def split_w(w):   # torch concat order is [edge_features(256), x(2048)]
        return w[:, :256], w[:, 256:]

    # conv(cat([edge, x])) == conv(edge, w_e) + conv(x, w_x); the BN scale is
    # pre-applied to the x-part so the fused epilogue of the edge-part
    # computes s*(conv_e + conv_x) + t exactly, without materializing the
    # 2304-channel concatenation.
    # TODO(synk): the three rate branches use different dilations, so the
    # 2048-channel x-part im2col cannot be shared across branches.
    sh, th = bn_scale_shift(p["head_bn"])
    whe, whx = split_w(p["head_w"])
    head_x = conv2d(x, whx, scale=sh)
    out_head = conv2d(f4, whe, scale=sh, shift=th, extra=head_x, act="relu")

    def branch(w, bn, edge_feat, rate):
        s, t = bn_scale_shift(bn)
        we, wx = split_w(w)
        x_part = conv2d(x, wx, padding=rate, dilation=rate, scale=s)
        return conv2d(edge_feat, we, padding=rate, dilation=rate,
                      scale=s, shift=t, extra=x_part, act="relu")

    r1, r2, r3 = atrous_rates
    out_1 = branch(p["rate1_w"], p["rate1_bn"], f2, r1)
    out_2 = branch(p["rate2_w"], p["rate2_bn"], f1, r2)
    out_3 = branch(p["rate3_w"], p["rate3_bn"], f0, r3)

    pooled = jnp.mean(x.astype(jnp.float32), axis=(1, 2), keepdims=True)
    out_tail = conv_bn_relu(pooled, p["tail_w"], p["tail_bn"])
    out_tail = bilinear_resize(out_tail, H, W,
                               align_corners=False).astype(jnp.bfloat16)

    cat = jnp.concatenate([out_head, out_1, out_2, out_3, out_tail], axis=-1)
    # Dropout(0.1) is eval-mode identity.
    return conv_bn_relu(cat, p["proj_w"], p["proj_bn"])


def confidence_forward(x, p):
    h = conv2d(x, p["d1_w"], stride=2, padding=1, shift=p["d1_b"], act="relu")
    h = conv2d(h, p["d2_w"], stride=2, padding=1, shift=p["d2_b"], act="relu")
    h = conv2d(h, p["d3_w"], stride=2, padding=1, shift=p["d3_b"], act="relu")
    h = conv2d(h, p["conv_w"], stride=1, padding=1, shift=p["conv_b"])
    h = conv_transpose2d(h, p["u3_w"], p["u3_b"], act="relu")
    h = conv_transpose2d(h, p["u2_w"], p["u2_b"], act="relu")
    return conv_transpose2d(h, p["u1_w"], p["u1_b"], act="sigmoid",
                            out_dtype=jnp.float32)


def net_forward(P, x_nchw, atrous_rates):
    N, _, H, W = x_nchw.shape
    assert H % 8 == 0 and W % 8 == 0
    x = jnp.transpose(x_nchw, (0, 2, 3, 1)).astype(jnp.float32)   # -> NHWC

    # layer0 (deep stem)
    h = conv_bn_relu(x, P["stem"]["w1"], P["stem"]["bn1"], stride=2, padding=1)
    h = conv_bn_relu(h, P["stem"]["w2"], P["stem"]["bn2"], padding=1)
    h = conv_bn_relu(h, P["stem"]["w3"], P["stem"]["bn3"], padding=1)

    side0 = side_output_forward(h, P["side0"])
    side0_up = bilinear_resize(side0, H, W, align_corners=True)

    h = maxpool_3x3_s2_p1(h)
    x_layer1 = layer_forward(h, P["layer1"], 1, 1, 1)
    side1 = side_output_forward(x_layer1, P["side1"])
    side1_up = bilinear_resize(side1, H, W, align_corners=True)

    h = layer_forward(x_layer1, P["layer2"], 2, 1, 2)
    side2 = side_output_forward(h, P["side2"])
    side2_up = bilinear_resize(side2, H, W, align_corners=True)

    # layer3 / layer4 with dilation 2 / 4 and stride 1 (as patched in Net)
    x_tmp = layer_forward(h, P["layer3"], 1, 2, 1)
    x4 = layer_forward(x_tmp, P["layer4"], 1, 4, 1)
    side4 = side_output_forward(x4, P["side4"])
    side4_up = bilinear_resize(side4, H, W, align_corners=True)

    fuse_in = jnp.concatenate([side4_up, side2_up, side1_up, side0_up], axis=-1)
    preds_boundary = conv2d(fuse_in, P["fuse_w"], act="sigmoid",
                            out_dtype=jnp.float32)

    a = aspp_forward(x4, [side0, side1, side2, side4], P["aspp"], atrous_rates)
    dec0_fine = conv2d(x_layer1, P["bot_fine_w"])
    a_up = bilinear_resize(a, x_layer1.shape[1], x_layer1.shape[2],
                           align_corners=True).astype(jnp.bfloat16)
    c = conv_bn_relu(jnp.concatenate([dec0_fine, a_up], axis=-1),
                     P["cls"]["w1"], P["cls"]["bn1"], padding=1)
    c = conv2d(c, P["cls"]["w2"], shift=P["cls"]["b2"], out_dtype=jnp.float32)
    seg = bilinear_resize(c, H, W, align_corners=False)

    confidence_map = confidence_forward(seg, P["conf"])

    def to_nchw(t):
        return jnp.transpose(t.astype(jnp.float32), (0, 3, 1, 2))

    return to_nchw(preds_boundary), to_nchw(seg), to_nchw(confidence_map)


# ----------------------------------------------------------------------------
if __name__ == "__main__":
    CLASSES = 8
    ATROUS_RATES = (1, 2, 3)

    key = jax.random.PRNGKey(0)
    x = jax.random.normal(jax.random.fold_in(key, 123),
                          (2, 3, 16, 16), jnp.float32)
    params = init_net_params(jax.random.fold_in(key, 7), CLASSES)

    preds_boundary, seg, conf = net_forward(params, x, ATROUS_RATES)
    jax.block_until_ready((preds_boundary, seg, conf))

    assert preds_boundary.shape == (2, 1, 16, 16)
    assert seg.shape == (2, CLASSES, 16, 16)
    assert conf.shape == (2, 1, 16, 16)
    assert bool(jnp.isfinite(preds_boundary).all())
    assert bool(jnp.isfinite(seg).all())
    assert bool(jnp.isfinite(conf).all())
    print("KERNEL_OK")
</pallas_src>

<mosaic_0001>
module attributes {stable_mosaic.version = 11 : i64} {
  func.func @_mm_single_kernel(%arg0: i32, %arg1: i32, %arg2: memref<64x128xbf16, #tpu.memory_space<vmem>>, %arg3: memref<128x128xbf16, #tpu.memory_space<vmem>>, %arg4: memref<1x128xf32, #tpu.memory_space<vmem>>, %arg5: memref<1x128xf32, #tpu.memory_space<vmem>>, %arg6: memref<64x128xbf16, #tpu.memory_space<vmem>>) attributes {dimension_semantics = [#tpu.dimension_semantics<parallel>, #tpu.dimension_semantics<parallel>], iteration_bounds = array<i64: 2, 1>, scalar_prefetch = 0 : i64, scratch_operands = 0 : i64, tpu.core_type = #tpu.core_type<tc>, window_params = [{transform_indices = @transform_0, window_bounds = array<i64: 64, 128>}, {pipeline_mode = #tpu.pipeline_mode<synchronous>, transform_indices = @transform_1, window_bounds = array<i64: 128, 128>}, {transform_indices = @transform_2, window_bounds = array<i64: 1, 128>}, {transform_indices = @transform_3, window_bounds = array<i64: 1, 128>}, {transform_indices = @transform_4, window_bounds = array<i64: 64, 128>}]} {
    %c128_i32 = arith.constant 128 : i32
    %0 = arith.muli %arg1, %c128_i32 : i32
    %1 = tpu.assume_multiple %0, 128 : i32
    %c0 = arith.constant 0 : index
    %2 = arith.index_cast %1 : i32 to index
    %3 = vector.load %arg3[%c0, %2] : memref<128x128xbf16, #tpu.memory_space<vmem>>, vector<128x128xbf16>
    %c0_0 = arith.constant 0 : index
    %c0_1 = arith.constant 0 : index
    %4 = vector.load %arg2[%c0_0, %c0_1] : memref<64x128xbf16, #tpu.memory_space<vmem>>, vector<64x128xbf16>
    %cst = arith.constant dense<0.000000e+00> : vector<64x128xf32>
    %5 = tpu.matmul %4, %3, %cst {dimension_numbers = #tpu.dot_dimension_numbers<[1], [0], [0], [1], [0, 0, 1, 1], [], []>} : vector<64x128xbf16>, vector<128x128xbf16>, vector<64x128xf32> -> vector<64x128xf32>
    %c0_2 = arith.constant 0 : index
    %c0_3 = arith.constant 0 : index
    %6 = vector.load %arg4[%c0_2, %c0_3] : memref<1x128xf32, #tpu.memory_space<vmem>>, vector<1x128xf32>
    %7 = vector.broadcast %6 : vector<1x128xf32> to vector<64x128xf32>
    %8 = arith.mulf %5, %7 : vector<64x128xf32>
    %c0_4 = arith.constant 0 : index
    %c0_5 = arith.constant 0 : index
    %9 = vector.load %arg5[%c0_4, %c0_5] : memref<1x128xf32, #tpu.memory_space<vmem>>, vector<1x128xf32>
    %10 = vector.broadcast %9 : vector<1x128xf32> to vector<64x128xf32>
    %11 = arith.addf %8, %10 : vector<64x128xf32>
    %cst_6 = arith.constant 0.000000e+00 : f32
    %12 = vector.broadcast %cst_6 : f32 to vector<64x128xf32>
    %13 = arith.maximumf %11, %12 : vector<64x128xf32>
    %14 = arith.truncf %13 : vector<64x128xf32> to vector<64x128xbf16>
    %c0_7 = arith.constant 0 : index
    %c0_8 = arith.constant 0 : index
    %15 = vector.load %arg6[%c0_7, %c0_8] : memref<64x128xbf16, #tpu.memory_space<vmem>>, vector<64x128xbf16>
    tpu.vector_store %arg6[%c0_7, %c0_8], %14 {strides = array<i32>} : memref<64x128xbf16, #tpu.memory_space<vmem>>, vector<64x128xbf16>,
    return
  }
  func.func @transform_0(%arg0: i32, %arg1: i32) -> (i32, i32) {
    %c0_i32 = arith.constant 0 : i32
    %c0_i32_0 = arith.constant 0 : i32
    return %arg0, %c0_i32 : i32, i32
  }
  func.func @transform_1(%arg0: i32, %arg1: i32) -> (i32, i32) {
    %c0_i32 = arith.constant 0 : i32
    %c0_i32_0 = arith.constant 0 : i32
    %c0_i32_1 = arith.constant 0 : i32
    return %c0_i32, %c0_i32_0 : i32, i32
  }
  func.func @transform_2(%arg0: i32, %arg1: i32) -> (i32, i32) {
    %c0_i32 = arith.constant 0 : i32
    %c0_i32_0 = arith.constant 0 : i32
    return %c0_i32, %arg1 : i32, i32
  }
  func.func @transform_3(%arg0: i32, %arg1: i32) -> (i32, i32) {
    %c0_i32 = arith.constant 0 : i32
    %c0_i32_0 = arith.constant 0 : i32
    return %c0_i32, %arg1 : i32, i32
  }
  func.func @transform_4(%arg0: i32, %arg1: i32) -> (i32, i32) {
    %c0_i32 = arith.constant 0 : i32
    return %arg0, %arg1 : i32, i32
  }
}

</mosaic_0001>

<llo_original>
// kernel: tpu_custom_call.1
$region0: #{tpu_custom_call.1}
  #allocation0 [shape = 'u32[]', space=smem, size = 0x4, offset = 0x4, fixed_abs, tag = 'smem constant byte address 0x4 - core index']
  #allocation1 [shape = 'u32[144,128]{1,0:T(1,128)}', space=vmem, size = 0x12000, scoped, tag = 'internal scratch']
  %s0 = inlined_call_operand.hbm [shape: bf16[128,128], index: 0, kind: input, shape index: {}]
  %s1 = inlined_call_operand.hbm [shape: bf16[128,128], index: 1, kind: input, shape index: {}]
  %s2 = inlined_call_operand.vmem [shape: f32[1,128], index: 2, kind: input, shape index: {}]
  %s3 = inlined_call_operand.vmem [shape: f32[1,128], index: 3, kind: input, shape index: {}]
  %s4 = inlined_call_operand.hbm [shape: bf16[128,128], index: 4, kind: output, shape index: {}]
  %s5 = sld [smem:[#allocation0]]
  $region57: #{tpu_custom_call.1} parent=0
    _
  %s7 = ssub.s32 1, %s5
  %s8 = scalar_select 0, %s7, %s5
  $region1: #{tpu_custom_call.1} parent=0
    #allocation2 [shape = 'u8[32768]{0}', space=vmem, size = 0x8000, scoped, tag = 'input window, operand 0']
    #allocation3 [shape = 's32[2]{0}', space=sflag, size = 0x8, scoped, tag = 'scoped memory for tpu_custom_call.1']
    #allocation4 [shape = 's32[2]{0}', space=sflag, size = 0x8, scoped, tag = 'scoped memory for tpu_custom_call.1']
    #allocation5 [shape = 'u8[32768]{0}', space=vmem, size = 0x8000, scoped, tag = 'input window, operand 1, single buffered']
    #allocation6 [shape = 's32[1]{0}', space=sflag, size = 0x4, scoped, tag = 'scoped memory for tpu_custom_call.1']
    #allocation7 [shape = 'u8[32768]{0}', space=vmem, size = 0x8000, scoped, tag = 'output window, operand 0']
    %9 = vsyncpa [#allocation3], 0
    %s10 = scalar_lea.sflag [#allocation3], 1
    %11 = vsyncpa %s10, 0
    %12 = vsyncpa [#allocation6], 0
    %13 = vsyncpa [#allocation4], 0
    %s14 = scalar_lea.sflag [#allocation4], 1
    %15 = vsyncpa %s14, 0
    loop: start=0, step=1, limit=4
    $region2: #{tpu_custom_call.1} parent=1 // loop_pre_header
      _
    $region3: #{tpu_custom_call.1} parent=1 // loop_header
      %s17 = sphi 0, %s21
      %p18 = scmp.ge.s32.totalorder %s17, 4
      %s24 = sphi 0, %s36
      %s25 = sphi 0, %s32
      %s26 = sphi 0, %s24
      %s27 = sphi 0, %s25
      %s28 = sphi 0, %s26
      %s29 = sphi 0, %s27
      %s39 = sphi 0, %s41
      %s42 = sphi 0, %s39
      %s43 = sphi 0, %s42
      %s59 = sphi 0, %s43
      %s63 = sphi 0, %s63
      %s65 = sphi 0, %s63
      %s66 = sphi 0, %s65
      %s80 = sphi 0, %s66
      %s86 = sphi 0, %s88
      %s89 = sphi 0, %s86
      %s90 = sphi 0, %s89
      %s106 = sphi 0, %s90
      %s112 = sphi 0, %s114
      %s115 = sphi 0, %s112
      %s116 = sphi 0, %s115
      %s132 = sphi 0, %s116
      %s140 = sphi 0, %s142
      %s143 = sphi 0, %s140
      %s144 = sphi 0, %s143
      %s160 = sphi 0, %s144
    $region4: #{tpu_custom_call.1} parent=1 // loop_header_branch
      %20 = sbr.rel (%p18) target = $region8
    $region5: #{tpu_custom_call.1} parent=1 // loop_body
      %s22 = ssub.s32 %s17, 1
      %s23 = ssub.s32 %s17, 2
      %s30 = sadd.s32 1, %s25
      %p31 = scmp.ge.s32.totalorder %s30, 1
      %s32 = scalar_select %p31, 0, %s30
      %s33 = sadd.s32 1, %s24
      %s34 = scalar_select %p31, %s33, %s24
      %p35 = scmp.ge.s32.totalorder %s34, 2
      %s36 = scalar_select %p35, 0, %s34
      %s37 = ssub.s32 %s24, %s36
      %p38 = scmp.eq.s32.totalorder %s37, 0
      %s40 = sadd.s32 %s39, 1
      %s41 = scalar_select %p38, %s39, %s40
      %p44 = pneg %p38
      %p45 = scmp.eq.s32.totalorder %s17, 1
      %p46 = por %p44, %p45
      %p47 = scmp.ne.s32.totalorder %s39, %s42
      %p48 = scmp.eq.s32.totalorder %s17, 0
      %p49 = por %p47, %p48
      %p50 = scmp.ne.s32.totalorder %s39, %s42
      %p51 = scmp.eq.s32.totalorder %s22, 1
      %p52 = por %p50, %p51
      %p53 = scmp.ne.s32.totalorder %s42, %s43
      %p54 = scmp.eq.s32.totalorder %s22, 0
      %p55 = por %p53, %p54
      %p56 = scmp.ne.s32.totalorder %s42, %s43
      %p57 = scmp.eq.s32.totalorder %s23, 1
      %p58 = por %p56, %p57
      %p60 = scmp.ne.s32.totalorder %s43, %s59
      %p61 = scmp.eq.s32.totalorder %s23, 0
      %p62 = por %p60, %p61
      %s64 = sadd.s32 %s63, 1
      %p67 = scmp.eq.s32.totalorder %s17, 1
      %p68 = scmp.ne.s32.totalorder %s63, %s65
      %p69 = scmp.eq.s32.totalorder %s17, 0
      %p70 = por %p68, %p69
      %p71 = scmp.ne.s32.totalorder %s63, %s65
      %p72 = scmp.eq.s32.totalorder %s22, 1
      %p73 = por %p71, %p72
      %p74 = scmp.ne.s32.totalorder %s65, %s66
      %p75 = scmp.eq.s32.totalorder %s22, 0
      %p76 = por %p74, %p75
      %p77 = scmp.ne.s32.totalorder %s65, %s66
      %p78 = scmp.eq.s32.totalorder %s23, 1
      %p79 = por %p77, %p78
      %p81 = scmp.ne.s32.totalorder %s66, %s80
      %p82 = scmp.eq.s32.totalorder %s23, 0
      %p83 = por %p81, %p82
      %s84 = ssub.s32 %s25, %s32
      %p85 = scmp.eq.s32.totalorder %s84, 0
      %s87 = sadd.s32 %s86, 1
      %s88 = scalar_select %p85, %s86, %s87
      %p91 = pneg %p85
      %p92 = scmp.eq.s32.totalorder %s17, 1
      %p93 = por %p91, %p92
      %p94 = scmp.ne.s32.totalorder %s86, %s89
      %p95 = scmp.eq.s32.totalorder %s17, 0
      %p96 = por %p94, %p95
      %p97 = scmp.ne.s32.totalorder %s86, %s89
      %p98 = scmp.eq.s32.totalorder %s22, 1
      %p99 = por %p97, %p98
      %p100 = scmp.ne.s32.totalorder %s89, %s90
      %p101 = scmp.eq.s32.totalorder %s22, 0
      %p102 = por %p100, %p101
      %p103 = scmp.ne.s32.totalorder %s89, %s90
      %p104 = scmp.eq.s32.totalorder %s23, 1
      %p105 = por %p103, %p104
      %p107 = scmp.ne.s32.totalorder %s90, %s106
      %p108 = scmp.eq.s32.totalorder %s23, 0
      %p109 = por %p107, %p108
      %s110 = ssub.s32 %s25, %s32
      %p111 = scmp.eq.s32.totalorder %s110, 0
      %s113 = sadd.s32 %s112, 1
      %s114 = scalar_select %p111, %s112, %s113
      %p117 = pneg %p111
      %p118 = scmp.eq.s32.totalorder %s17, 1
      %p119 = por %p117, %p118
      %p120 = scmp.ne.s32.totalorder %s112, %s115
      %p121 = scmp.eq.s32.totalorder %s17, 0
      %p122 = por %p120, %p121
      %p123 = scmp.ne.s32.totalorder %s112, %s115
      %p124 = scmp.eq.s32.totalorder %s22, 1
      %p125 = por %p123, %p124
      %p126 = scmp.ne.s32.totalorder %s115, %s116
      %p127 = scmp.eq.s32.totalorder %s22, 0
      %p128 = por %p126, %p127
      %p129 = scmp.ne.s32.totalorder %s115, %s116
      %p130 = scmp.eq.s32.totalorder %s23, 1
      %p131 = por %p129, %p130
      %p133 = scmp.ne.s32.totalorder %s116, %s132
      %p134 = scmp.eq.s32.totalorder %s23, 0
      %p135 = por %p133, %p134
      %s136 = ssub.s32 %s24, %s36
      %s137 = ssub.s32 %s25, %s32
      %s138 = sor.u32 %s136, %s137
      %p139 = scmp.eq.s32.totalorder %s138, 0
      %s141 = sadd.s32 %s140, 1
      %s142 = scalar_select %p139, %s140, %s141
      %p145 = pneg %p139
      %p146 = scmp.eq.s32.totalorder %s17, 1
      %p147 = por %p145, %p146
      %p148 = scmp.ne.s32.totalorder %s140, %s143
      %p149 = scmp.eq.s32.totalorder %s17, 0
      %p150 = por %p148, %p149
      %p151 = scmp.ne.s32.totalorder %s140, %s143
      %p152 = scmp.eq.s32.totalorder %s22, 1
      %p153 = por %p151, %p152
      %p154 = scmp.ne.s32.totalorder %s143, %s144
      %p155 = scmp.eq.s32.totalorder %s22, 0
      %p156 = por %p154, %p155
      %p157 = scmp.ne.s32.totalorder %s143, %s144
      %p158 = scmp.eq.s32.totalorder %s23, 1
      %p159 = por %p157, %p158
      %p161 = scmp.ne.s32.totalorder %s144, %s160
      %p162 = scmp.eq.s32.totalorder %s23, 0
      %p163 = por %p161, %p162
      %p164 = scmp.le.s32.totalorder 1, %s17
      %p165 = scmp.lt.s32.totalorder %s17, 3
      %p166 = pnand %p164, %p165
      %p167 = pneg %p166
      // Predicated region
      $region9: #{tpu_custom_call.1} parent=5 // pred_check
        _
      $region10: #{tpu_custom_call.1} parent=5 // pred_check_branch
        %169 = sbr.rel (%p166) target = $region12
      $region11: #{tpu_custom_call.1} parent=5 // pred_region
        %s170 = ssub.s32 %s17, 1
        // Predicated region
        $region13: #{tpu_custom_call.1} parent=11 // pred_check
          %p171 = pneg %p76
        $region14: #{tpu_custom_call.1} parent=11 // pred_check_branch
          %173 = sbr.rel (%p171) target = $region16
        $region15: #{tpu_custom_call.1} parent=11 // pred_region
          %s175 = ssub.s32 1024, 1024
          %176 = vsyncadd [#allocation6], %s175
          %s177 = sshll.u32 [#allocation5], 4
          %s178 = int_to_ptr.vmem [resolvable:$true] %s177
          %183 = dma.hbm_to_vmem [thread:$0]  %s1, 1024, %s178, [#allocation6], 64, 64, 4
        $region16: #{tpu_custom_call.1} parent=11 // pred_fallthru
          _
        // Predicated region
        $region17: #{tpu_custom_call.1} parent=11 // pred_check
          %p184 = pneg %p102
        $region18: #{tpu_custom_call.1} parent=11 // pred_check_branch
          %186 = sbr.rel (%p184) target = $region20
        $region19: #{tpu_custom_call.1} parent=11 // pred_region
          %p187 = scmp.lt.s32.totalorder %s27, 0
          %s188 = scalar_select %p187, %s27, 0
          %s189 = scalar_lea.vmem %s2, %s188
        $region20: #{tpu_custom_call.1} parent=11 // pred_fallthru
          _
        // Predicated region
        $region21: #{tpu_custom_call.1} parent=11 // pred_check
          %p190 = pneg %p128
        $region22: #{tpu_custom_call.1} parent=11 // pred_check_branch
          %192 = sbr.rel (%p190) target = $region24
        $region23: #{tpu_custom_call.1} parent=11 // pred_region
          %p193 = scmp.lt.s32.totalorder %s27, 0
          %s194 = scalar_select %p193, %s27, 0
          %s195 = scalar_lea.vmem %s3, %s194
        $region24: #{tpu_custom_call.1} parent=11 // pred_fallthru
          _
      $region12: #{tpu_custom_call.1} parent=5 // pred_fallthru
        _
      %p196 = scmp.lt.s32.totalorder %s17, 2
      // Predicated region
      $region25: #{tpu_custom_call.1} parent=5 // pred_check
        %p197 = pneg %p196
      $region26: #{tpu_custom_call.1} parent=5 // pred_check_branch
        %199 = sbr.rel (%p197) target = $region28
      $region27: #{tpu_custom_call.1} parent=5 // pred_region
        // Predicated region
        $region29: #{tpu_custom_call.1} parent=27 // pred_check
          %p200 = pneg %p49
        $region30: #{tpu_custom_call.1} parent=27 // pred_check_branch
          %202 = sbr.rel (%p200) target = $region32
        $region31: #{tpu_custom_call.1} parent=27 // pred_region
          %s203 = sand.u32 %s39, 1
          %s204 = scalar_lea.sflag [#allocation3], %s203
          %s205 = sand.u32 %s39, 1
          %s206 = smul.addr %s205, 32
          %s207 = scalar_lea.vmem [#allocation2], %s206
          %s208 = smul.u32 8, %s24
          %s210 = ssub.s32 512, 512
          %211 = vsyncadd %s204, %s210
          %s212 = smul.addr %s208, 64
          %s213 = scalar_lea.hbm %s0, %s212
          %s214 = sshll.u32 %s207, 4
          %s215 = int_to_ptr.vmem [resolvable:$true] %s214
          %220 = dma.hbm_to_vmem [thread:$0]  %s213, 512, %s215, %s204, 64, 64, 4
        $region32: #{tpu_custom_call.1} parent=27 // pred_fallthru
          _
      $region28: #{tpu_custom_call.1} parent=5 // pred_fallthru
        _
      %p221 = scmp.le.s32.totalorder 1, %s17
      %p222 = scmp.lt.s32.totalorder %s17, 3
      %p223 = pnand %p221, %p222
      %p224 = pneg %p223
      // Predicated region
      $region33: #{tpu_custom_call.1} parent=5 // pred_check
        _
      $region34: #{tpu_custom_call.1} parent=5 // pred_check_branch
        %226 = sbr.rel (%p223) target = $region36
      $region35: #{tpu_custom_call.1} parent=5 // pred_region
        %s227 = ssub.s32 %s17, 1
        %s228 = sand.u32 %s42, 1
        %s229 = scalar_lea.sflag [#allocation3], %s228
        %s230 = sand.u32 %s42, 1
        %s231 = smul.addr %s230, 32
        %s232 = scalar_lea.vmem [#allocation2], %s231
        // Predicated region
        $region37: #{tpu_custom_call.1} parent=35 // pred_check
          %p233 = pneg %p55
        $region38: #{tpu_custom_call.1} parent=35 // pred_check_branch
          %235 = sbr.rel (%p233) target = $region40
        $region39: #{tpu_custom_call.1} parent=35 // pred_region
          %236 = dma.done %s229, 512
        $region40: #{tpu_custom_call.1} parent=35 // pred_fallthru
          _
        // Predicated region
        $region41: #{tpu_custom_call.1} parent=35 // pred_check
          %p237 = pneg %p76
        $region42: #{tpu_custom_call.1} parent=35 // pred_check_branch
          %239 = sbr.rel (%p237) target = $region44
        $region43: #{tpu_custom_call.1} parent=35 // pred_region
          %240 = dma.done [#allocation6], 1024
        $region44: #{tpu_custom_call.1} parent=35 // pred_fallthru
          _
        %s241 = sand.u32 %s42, 1
        %s242 = scalar_lea.sflag [#allocation3], %s241
        %s243 = sand.u32 %s42, 1
        %s244 = smul.addr %s243, 32
        %s245 = scalar_lea.vmem [#allocation2], %s244
        %p246 = pneg %p55
        %p247 = pneg %p52
        %p248 = pneg %p76
        %p249 = pneg %p73
        %p250 = scmp.lt.s32.totalorder %s27, 0
        %s251 = scalar_select %p250, %s27, 0
        %s252 = scalar_lea.vmem %s2, %s251
        %p253 = pneg %p102
        %p254 = pneg %p99
        %p255 = scmp.lt.s32.totalorder %s27, 0
        %s256 = scalar_select %p255, %s27, 0
        %s257 = scalar_lea.vmem %s3, %s256
        %p258 = pneg %p128
        %p259 = pneg %p125
        %p260 = pneg %p156
        %p261 = pneg %p153
        %s262 = sand.u32 %s143, 1
        %s263 = scalar_lea.sflag [#allocation4], %s262
        %s264 = sand.u32 %s143, 1
        %s265 = smul.addr %s264, 32
        %s266 = scalar_lea.vmem [#allocation7], %s265
        %s267 = smul.u32 8, %s26
        %p268 = scmp.lt.s32.totalorder %s27, 0
        %s269 = scalar_select %p268, %s27, 0
        %s270 = scalar_lea.vmem %s2, %s269
        %p271 = scmp.lt.s32.totalorder %s27, 0
        %s272 = scalar_select %p271, %s27, 0
        %s273 = scalar_lea.vmem %s3, %s272
        %s274 = smul.u32 8, %s26
        %s276 = smul.u32 %s27, 128
        %s277 = sshra.s32 %s276, 7
        %s278 = sand.u32 %s276, 127
        %s279 = smul.addr %s277, 4
        %s280 = scalar_lea.vmem [#allocation5], %s279
        %v281 = vld [vmem:[%s280] sm:$0xf]
        %v282 = vld [vmem:[%s280 + $0x4] sm:$0xf]
        %v283 = vld [vmem:[%s280 + $0x8] sm:$0xf]
        %v284 = vld [vmem:[%s280 + $0xc] sm:$0xf]
        %v285 = vld [vmem:[%s280 + $0x10] sm:$0xf]
        %v286 = vld [vmem:[%s280 + $0x14] sm:$0xf]
        %v287 = vld [vmem:[%s280 + $0x18] sm:$0xf]
        %v288 = vld [vmem:[%s280 + $0x1c] sm:$0xf]
        %v289 = vld [vmem:[%s280 + $0x20] sm:$0xf]
        %v290 = vld [vmem:[%s280 + $0x24] sm:$0xf]
        %v291 = vld [vmem:[%s280 + $0x28] sm:$0xf]
        %v292 = vld [vmem:[%s280 + $0x2c] sm:$0xf]
        %v293 = vld [vmem:[%s280 + $0x30] sm:$0xf]
        %v294 = vld [vmem:[%s280 + $0x34] sm:$0xf]
        %v295 = vld [vmem:[%s280 + $0x38] sm:$0xf]
        %v296 = vld [vmem:[%s280 + $0x3c] sm:$0xf]
        %v297 = vld [vmem:[%s232] sm:$0xf]
        %v298 = vld [vmem:[%s232 + $0x4] sm:$0xf]
        %v299 = vld [vmem:[%s232 + $0x8] sm:$0xf]
        %v300 = vld [vmem:[%s232 + $0xc] sm:$0xf]
        %v301 = vld [vmem:[%s232 + $0x10] sm:$0xf]
        %v302 = vld [vmem:[%s232 + $0x14] sm:$0xf]
        %v303 = vld [vmem:[%s232 + $0x18] sm:$0xf]
        %v304 = vld [vmem:[%s232 + $0x1c] sm:$0xf]
        %v313 = vunpack.c.l.b16 %v297
        %v314 = vunpack.c.l.b16 %v298
        %v315 = vunpack.c.l.b16 %v299
        %v316 = vunpack.c.l.b16 %v300
        %v317 = vunpack.c.l.b16 %v301
        %v318 = vunpack.c.l.b16 %v302
        %v319 = vunpack.c.l.b16 %v303
        %v320 = vunpack.c.l.b16 %v304
        %v321 = vpack.c.b16 %v314, %v313
        %v322 = vpack.c.b16 %v316, %v315
        %v323 = vpack.c.b16 %v318, %v317
        %v324 = vpack.c.b16 %v320, %v319
        %v345 = vunpack.c.l.b16 %v281
        %v346 = vunpack.c.l.b16 %v282
        %v347 = vunpack.c.l.b16 %v283
        %v348 = vunpack.c.l.b16 %v284
        %v349 = vunpack.c.l.b16 %v285
        %v350 = vunpack.c.l.b16 %v286
        %v351 = vunpack.c.l.b16 %v287
        %v352 = vunpack.c.l.b16 %v288
        %v353 = vunpack.c.l.b16 %v289
        %v354 = vunpack.c.l.b16 %v290
        %v355 = vunpack.c.l.b16 %v291
        %v356 = vunpack.c.l.b16 %v292
        %v357 = vunpack.c.l.b16 %v293
        %v358 = vunpack.c.l.b16 %v294
        %v359 = vunpack.c.l.b16 %v295
        %v360 = vunpack.c.l.b16 %v296
        %v361 = vpack.c.b16 %v346, %v345
        %v362 = vpack.c.b16 %v348, %v347
        %v363 = vpack.c.b16 %v350, %v349
        %v364 = vpack.c.b16 %v352, %v351
        %v365 = vpack.c.b16 %v354, %v353
        %v366 = vpack.c.b16 %v356, %v355
        %v367 = vpack.c.b16 %v358, %v357
        %v368 = vpack.c.b16 %v360, %v359
        %377 = vmatprep.subr.bf16.mxu0 0
        %378 = vmatpush1.bf16.msra.mxu0 %v368
        %379 = vmatprep.subr.bf16.mxu0 0
        %380 = vmatpush1.bf16.msra.mxu0 %v367
        %381 = vmatprep.subr.bf16.mxu0 0
        %382 = vmatpush1.bf16.msra.mxu0 %v366
        %383 = vmatprep.subr.bf16.mxu0 0
        %384 = vmatpush1.bf16.msra.mxu0 %v365
        %385 = vmatprep.subr.bf16.mxu0 0
        %386 = vmatpush1.bf16.msra.mxu0 %v364
        %387 = vmatprep.subr.bf16.mxu0 0
        %388 = vmatpush1.bf16.msra.mxu0 %v363
        %389 = vmatprep.subr.bf16.mxu0 0
        %390 = vmatpush1.bf16.msra.mxu0 %v362
        %391 = vmatprep.subr.bf16.mxu0 0
        %392 = vmatpush1.bf16.msra.mxu0 %v361
        %393 = vmatprep.subr.bf16.mxu0 0
        %394 = vmatpush2.bf16.msra.mxu0 0
        %395 = vmatprep.subr.bf16.mxu0 0
        %396 = vmatpush2.bf16.msra.mxu0 0
        %397 = vmatprep.subr.bf16.mxu0 0
        %398 = vmatpush2.bf16.msra.mxu0 0
        %399 = vmatprep.subr.bf16.mxu0 0
        %400 = vmatpush2.bf16.msra.mxu0 0
        %401 = vmatprep.subr.bf16.mxu0 0
        %402 = vmatpush2.bf16.msra.mxu0 0
        %403 = vmatprep.subr.bf16.mxu0 0
        %404 = vmatpush2.bf16.msra.mxu0 0
        %405 = vmatprep.subr.bf16.mxu0 0
        %406 = vmatpush2.bf16.msra.mxu0 0
        %407 = vmatprep.subr.bf16.mxu0 0
        %408 = vmatpush2.bf16.msra.mxu0 0
        %409 = vmatprep.mubr.bf16.mxu0 0
        %410 = vmatmul.mubr.bf16.gmra.mxu0 %v321
        %v411 = vpop.f32.mrf.mxu0
        %v412 = vadd.f32 0.0, %v411
        %v413 = vpop.f32.mrf.mxu0
        %v414 = vpop.f32.mrf.mxu0
        %v415 = vadd.f32 0.0, %v414
        %v416 = vpop.f32.mrf.mxu0
        %417 = vmatprep.mubr.bf16.mxu0 0
        %418 = vmatmul.mubr.bf16.gmra.mxu0 %v322
        %v419 = vpop.f32.mrf.mxu0
        %v420 = vadd.f32 0.0, %v419
        %v421 = vpop.f32.mrf.mxu0
        %v422 = vpop.f32.mrf.mxu0
        %v423 = vadd.f32 0.0, %v422
        %v424 = vpop.f32.mrf.mxu0
        %425 = vmatprep.mubr.bf16.mxu0 0
        %426 = vmatmul.mubr.bf16.gmra.mxu0 %v323
        %v427 = vpop.f32.mrf.mxu0
        %v428 = vadd.f32 0.0, %v427
        %v429 = vpop.f32.mrf.mxu0
        %v430 = vpop.f32.mrf.mxu0
        %v431 = vadd.f32 0.0, %v430
        %v432 = vpop.f32.mrf.mxu0
        %433 = vmatprep.mubr.bf16.mxu0 0
        %434 = vmatmul.mubr.bf16.gmra.mxu0 %v324
        %v435 = vpop.f32.mrf.mxu0
        %v436 = vadd.f32 0.0, %v435
        %v437 = vpop.f32.mrf.mxu0
        %v438 = vpop.f32.mrf.mxu0
        %v439 = vadd.f32 0.0, %v438
        %v440 = vpop.f32.mrf.mxu0
        %441 = vdwg.mxu0
        %v442 = vld [vmem:[%s270] sm:$0x1]
        %v444 = vlaneseq
        %v445 = vshrl.u32 %v444, 7
        %v446 = vsub.s32 0, %v445
        %v447 = vrot.slane %v442, %v446
        %v449 = vmul.f32 %v412, %v447
        %v450 = vmul.f32 %v415, %v447
        %v451 = vmul.f32 %v420, %v447
        %v452 = vmul.f32 %v423, %v447
        %v453 = vmul.f32 %v428, %v447
        %v454 = vmul.f32 %v431, %v447
        %v455 = vmul.f32 %v436, %v447
        %v456 = vmul.f32 %v439, %v447
        %v457 = vld [vmem:[%s273] sm:$0x1]
        %v459 = vlaneseq
        %v460 = vshrl.u32 %v459, 7
        %v461 = vsub.s32 0, %v460
        %v462 = vrot.slane %v457, %v461
        %v464 = vadd.f32 %v449, %v462
        %v465 = vadd.f32 %v450, %v462
        %v466 = vadd.f32 %v451, %v462
        %v467 = vadd.f32 %v452, %v462
        %v468 = vadd.f32 %v453, %v462
        %v469 = vadd.f32 %v454, %v462
        %v470 = vadd.f32 %v455, %v462
        %v471 = vadd.f32 %v456, %v462
        %v472 = vmax.f32 %v464, 0.0
        %v473 = vmax.f32 %v465, 0.0
        %v474 = vmax.f32 %v466, 0.0
        %v475 = vmax.f32 %v467, 0.0
        %v476 = vmax.f32 %v468, 0.0
        %v477 = vmax.f32 %v469, 0.0
        %v478 = vmax.f32 %v470, 0.0
        %v479 = vmax.f32 %v471, 0.0
        %v480 = vpack.c.bf16 %v473, %v472
        %v481 = vpack.c.bf16 %v475, %v474
        %v482 = vpack.c.bf16 %v477, %v476
        %v483 = vpack.c.bf16 %v479, %v478
        %v488 = vunpack.c.l.b16 %v480
        %v489 = vunpack.c.h.b16 %v480
        %v490 = vunpack.c.l.b16 %v481
        %v491 = vunpack.c.h.b16 %v481
        %v492 = vunpack.c.l.b16 %v482
        %v493 = vunpack.c.h.b16 %v482
        %v494 = vunpack.c.l.b16 %v483
        %v495 = vunpack.c.h.b16 %v483
        %v496 = vpack.c.b16 %v488, %v488
        %v497 = vpack.c.b16 %v489, %v489
        %v498 = vpack.c.b16 %v490, %v490
        %v499 = vpack.c.b16 %v491, %v491
        %v500 = vpack.c.b16 %v492, %v492
        %v501 = vpack.c.b16 %v493, %v493
        %v502 = vpack.c.b16 %v494, %v494
        %v503 = vpack.c.b16 %v495, %v495
        %512 = vst [vmem:[%s266] sm:$0xf] %v496
        %513 = vst [vmem:[%s266 + $0x4] sm:$0xf] %v497
        %514 = vst [vmem:[%s266 + $0x8] sm:$0xf] %v498
        %515 = vst [vmem:[%s266 + $0xc] sm:$0xf] %v499
        %516 = vst [vmem:[%s266 + $0x10] sm:$0xf] %v500
        %517 = vst [vmem:[%s266 + $0x14] sm:$0xf] %v501
        %518 = vst [vmem:[%s266 + $0x18] sm:$0xf] %v502
        %519 = vst [vmem:[%s266 + $0x1c] sm:$0xf] %v503
        %s520 = sand.u32 %s143, 1
        %s521 = scalar_lea.sflag [#allocation4], %s520
        %s522 = sand.u32 %s143, 1
        %s523 = smul.addr %s522, 32
        %s524 = scalar_lea.vmem [#allocation7], %s523
        // Predicated region
        $region45: #{tpu_custom_call.1} parent=35 // pred_check
          %p525 = pneg %p153
        $region46: #{tpu_custom_call.1} parent=35 // pred_check_branch
          %527 = sbr.rel (%p525) target = $region48
        $region47: #{tpu_custom_call.1} parent=35 // pred_region
          %s528 = smul.u32 8, %s26
          %s530 = ssub.s32 512, 512
          %531 = vsyncadd %s521, %s530
          %s532 = sadd.s32 %s27, %s528
          %s533 = smul.addr %s532, 64
          %s534 = scalar_lea.hbm %s4, %s533
          %s535 = sshll.u32 %s524, 4
          %s536 = int_to_ptr.vmem [resolvable:$true] %s535
          %541 = dma.vmem_to_hbm [thread:$0]  %s536, 512, %s534, %s521, 64, 64, 4
        $region48: #{tpu_custom_call.1} parent=35 // pred_fallthru
          _
      $region36: #{tpu_custom_call.1} parent=5 // pred_fallthru
        _
      %p542 = scmp.le.s32.totalorder 2, %s17
      // Predicated region
      $region49: #{tpu_custom_call.1} parent=5 // pred_check
        %p543 = pneg %p542
      $region50: #{tpu_custom_call.1} parent=5 // pred_check_branch
        %545 = sbr.rel (%p543) target = $region52
      $region51: #{tpu_custom_call.1} parent=5 // pred_region
        %s546 = ssub.s32 %s17, 2
        // Predicated region
        $region53: #{tpu_custom_call.1} parent=51 // pred_check
          %p547 = pneg %p159
        $region54: #{tpu_custom_call.1} parent=51 // pred_check_branch
          %549 = sbr.rel (%p547) target = $region56
        $region55: #{tpu_custom_call.1} parent=51 // pred_region
          %s550 = sand.u32 %s144, 1
          %s551 = scalar_lea.sflag [#allocation4], %s550
          %s552 = sand.u32 %s144, 1
          %s553 = smul.addr %s552, 32
          %s554 = scalar_lea.vmem [#allocation7], %s553
          %555 = dma.done %s551, 512
        $region56: #{tpu_custom_call.1} parent=51 // pred_fallthru
          _
      $region52: #{tpu_custom_call.1} parent=5 // pred_fallthru
        _
    $region6: #{tpu_custom_call.1} parent=1 // loop_footer
      %s21 = sadd.s32 1, %s17
    $region7: #{tpu_custom_call.1} parent=1 // loop_footer_branch
      %16 = sbr.rel target = $region3
    $region8: #{tpu_custom_call.1} parent=1 // loop_exit
      _
    %556 = vsyncpa [#allocation3], 1
    %s557 = scalar_lea.sflag [#allocation3], 1
    %558 = vsyncpa %s557, 1
    %559 = vsyncpa [#allocation6], 1
    %560 = vsyncpa [#allocation4], 1
    %s561 = scalar_lea.sflag [#allocation4], 1
    %562 = vsyncpa %s561, 1

</llo_original>
